<compile_context>
chip_gen: v5e
topology: v5e:2x2
jax: 0.10.0
libtpu: 0.0.40
codegen_flags: <defaults>
</compile_context>

<pallas_src>
import numpy as np
import jax
import jax.numpy as jnp
from jax.experimental import pallas as pl
from jax.experimental.pallas import tpu as pltpu


def _round_up(x, m):
    return ((x + m - 1) // m) * m


def _fourier_kernel(x_ref, freqs_ref, out_ref):
    # x_ref:     (1, TN)   lane-dense tile of x
    # freqs_ref: (H, 1)    resident across the whole grid
    # out_ref:   (2H, TN)  cos -> sublane rows [0, H), sin -> rows [H, 2H)
    half = freqs_ref.shape[0]
    # Outer product via broadcasting, 2*pi scale fused in-kernel: (H, TN) f32.
    arg = (2.0 * np.pi) * freqs_ref[...] * x_ref[...]
    out_ref[0:half, :] = jnp.cos(arg).astype(out_ref.dtype)
    out_ref[half:2 * half, :] = jnp.sin(arg).astype(out_ref.dtype)


def fourier_embedding(x, freqs, *, block_n=512, out_dtype=jnp.float32):
    """x: (N,) float array, freqs: (H,) float array -> (N, 2*H)."""
    n = int(x.shape[0])
    h = int(freqs.shape[0])

    # Tile size along N: multiple of 128 lanes; don't over-pad tiny inputs.
    tn = min(block_n, _round_up(n, 128))
    npad = _round_up(n, tn)

    # Lane-dense operands (f32 compute; cast at the store for bf16 output).
    x_t = jnp.pad(x.astype(jnp.float32), (0, npad - n)).reshape(1, npad)
    f_t = freqs.astype(jnp.float32).reshape(h, 1)

    out_bytes = jnp.dtype(out_dtype).itemsize
    out_t = pl.pallas_call(
        _fourier_kernel,
        out_shape=jax.ShapeDtypeStruct((2 * h, npad), out_dtype),
        grid_spec=pltpu.PrefetchScalarGridSpec(
            num_scalar_prefetch=0,
            grid=(npad // tn,),
            in_specs=[
                pl.BlockSpec((1, tn), lambda i: (0, i)),   # x: tiled along lanes
                pl.BlockSpec((h, 1), lambda i: (0, 0)),    # freqs: resident
            ],
            out_specs=pl.BlockSpec((2 * h, tn), lambda i: (0, i)),
        ),
        compiler_params=pltpu.CompilerParams(
            dimension_semantics=("parallel",),   # shards N across TCs on v7x
            vmem_limit_bytes=32 * 1024 * 1024,   # safe for v7x's 64 MiB VMEM
        ),
        cost_estimate=pl.CostEstimate(
            flops=2 * n * h,                 # outer product + scale
            transcendentals=2 * n * h,       # cos + sin per element
            bytes_accessed=4 * n + 4 * h + 2 * n * h * out_bytes,
        ),
    )(x_t, f_t)

    # (2H, Npad) -> (N, 2H): pure layout plumbing outside the kernel.
    return out_t.T[:n, :]


if __name__ == "__main__":
    # Module config (small, consistent with the forward pass)
    num_channels = 32     # -> freqs has shape (16,)
    scale = 16.0
    batch = 8             # x is a 1-D tensor of per-sample scalars

    key = jax.random.PRNGKey(0)
    k_freq, k_x = jax.random.split(key)

    # Deterministic "buffer" init: randn(num_channels // 2) * scale
    freqs = jax.random.normal(k_freq, (num_channels // 2,), dtype=jnp.float32) * scale
    x = jax.random.normal(k_x, (batch,), dtype=jnp.float32)

    out = fourier_embedding(x, freqs)
    out = jax.block_until_ready(out)

    # Pure-JAX reference check
    arg_ref = x[:, None] * (2.0 * np.pi * freqs)[None, :]
    ref = jnp.concatenate([jnp.cos(arg_ref), jnp.sin(arg_ref)], axis=1)
    assert out.shape == (batch, num_channels), out.shape
    np.testing.assert_allclose(np.asarray(out), np.asarray(ref), rtol=1e-5, atol=1e-5)

    print("KERNEL_OK")
</pallas_src>

<mosaic_0001>
module attributes {stable_mosaic.version = 11 : i64} {
  func.func @_fourier_kernel(%arg0: i32, %arg1: memref<1x128xf32, #tpu.memory_space<vmem>>, %arg2: memref<16x1xf32, #tpu.memory_space<vmem>>, %arg3: memref<32x128xf32, #tpu.memory_space<vmem>>) attributes {dimension_semantics = [#tpu.dimension_semantics<parallel>], iteration_bounds = array<i64: 1>, scalar_prefetch = 0 : i64, scratch_operands = 0 : i64, tpu.core_type = #tpu.core_type<tc>, window_params = [{transform_indices = @transform_0, window_bounds = array<i64: 1, 128>}, {pipeline_mode = #tpu.pipeline_mode<synchronous>, transform_indices = @transform_1, window_bounds = array<i64: 16, 1>}, {transform_indices = @transform_2, window_bounds = array<i64: 32, 128>}]} {
    %c0 = arith.constant 0 : index
    %c0_0 = arith.constant 0 : index
    %0 = vector.load %arg2[%c0, %c0_0] : memref<16x1xf32, #tpu.memory_space<vmem>>, vector<16x1xf32>
    %cst = arith.constant 6.28318548 : f32
    %1 = vector.broadcast %cst : f32 to vector<16x1xf32>
    %2 = arith.mulf %1, %0 : vector<16x1xf32>
    %c0_1 = arith.constant 0 : index
    %c0_2 = arith.constant 0 : index
    %3 = vector.load %arg1[%c0_1, %c0_2] : memref<1x128xf32, #tpu.memory_space<vmem>>, vector<1x128xf32>
    %4 = vector.broadcast %2 : vector<16x1xf32> to vector<16x128xf32>
    %5 = vector.broadcast %3 : vector<1x128xf32> to vector<16x128xf32>
    %6 = arith.mulf %4, %5 : vector<16x128xf32>
    %7 = math.cos %6 : vector<16x128xf32>
    %c0_3 = arith.constant 0 : index
    %c0_4 = arith.constant 0 : index
    %8 = vector.load %arg3[%c0_3, %c0_4] : memref<32x128xf32, #tpu.memory_space<vmem>>, vector<16x128xf32>
    tpu.vector_store %arg3[%c0_3, %c0_4], %7 {strides = array<i32>} : memref<32x128xf32, #tpu.memory_space<vmem>>, vector<16x128xf32>,
    %9 = math.sin %6 : vector<16x128xf32>
    %c16 = arith.constant 16 : index
    %c0_5 = arith.constant 0 : index
    %10 = vector.load %arg3[%c16, %c0_5] : memref<32x128xf32, #tpu.memory_space<vmem>>, vector<16x128xf32>
    tpu.vector_store %arg3[%c16, %c0_5], %9 {strides = array<i32>} : memref<32x128xf32, #tpu.memory_space<vmem>>, vector<16x128xf32>,
    return
  }
  func.func @transform_0(%arg0: i32) -> (i32, i32) {
    %c0_i32 = arith.constant 0 : i32
    %c0_i32_0 = arith.constant 0 : i32
    return %c0_i32, %arg0 : i32, i32
  }
  func.func @transform_1(%arg0: i32) -> (i32, i32) {
    %c0_i32 = arith.constant 0 : i32
    %c0_i32_0 = arith.constant 0 : i32
    %c0_i32_1 = arith.constant 0 : i32
    return %c0_i32, %c0_i32_0 : i32, i32
  }
  func.func @transform_2(%arg0: i32) -> (i32, i32) {
    %c0_i32 = arith.constant 0 : i32
    %c0_i32_0 = arith.constant 0 : i32
    return %c0_i32, %arg0 : i32, i32
  }
}

</mosaic_0001>

<llo_original>
// kernel: tpu_custom_call.1
$region0: #{tpu_custom_call.1}
  #allocation0 [shape = 'u32[]', space=smem, size = 0x4, offset = 0x4, fixed_abs, tag = 'smem constant byte address 0x4 - core index']
  #allocation1 [shape = 'u32[72,128]{1,0:T(1,128)}', space=vmem, size = 0x9000, scoped, tag = 'internal scratch']
  %s0 = inlined_call_operand.vmem [shape: f32[1,128], index: 0, kind: input, shape index: {}]
  %s1 = inlined_call_operand.vmem [shape: f32[16,1], index: 1, kind: input, shape index: {}]
  %s2 = inlined_call_operand.hbm [shape: f32[32,128], index: 2, kind: output, shape index: {}]
  %s3 = sld [smem:[#allocation0]]
  $region18: #{tpu_custom_call.1} parent=0
    _
  %s5 = ssub.s32 1, %s3
  %s6 = scalar_select 0, %s5, %s3
  $region1: #{tpu_custom_call.1} parent=0
    #allocation2 [shape = 'u8[16384]{0}', space=vmem, size = 0x4000, scoped, tag = 'output window, operand 0, single buffered']
    #allocation3 [shape = 's32[1]{0}', space=sflag, size = 0x4, scoped, tag = 'scoped memory for tpu_custom_call.1']
    %7 = vsyncpa [#allocation3], 0
    // Predicated region
    $region2: #{tpu_custom_call.1} parent=1 // pred_check
      _
    $region3: #{tpu_custom_call.1} parent=1 // pred_check_branch
      %9 = sbr.rel (0) target = $region5
    $region4: #{tpu_custom_call.1} parent=1 // pred_region
      _
    $region5: #{tpu_custom_call.1} parent=1 // pred_fallthru
      _
    // Predicated region
    $region6: #{tpu_custom_call.1} parent=1 // pred_check
      _
    $region7: #{tpu_custom_call.1} parent=1 // pred_check_branch
      %11 = sbr.rel (0) target = $region9
    $region8: #{tpu_custom_call.1} parent=1 // pred_region
      _
    $region9: #{tpu_custom_call.1} parent=1 // pred_fallthru
      _
    %v12 = vld [vmem:[%s1] sm:$0xff]
    %v13 = vld [vmem:[%s1 + $0x8] sm:$0xff]
    %v14 = vmul.f32 %v12, 6.2831855
    %v15 = vmul.f32 %v13, 6.2831855
    %v16 = vld [vmem:[%s0] sm:$0x1]
    %18 = vset.pattern.permute.xlu0 0
    %19 = vperm.xlu0 %18, %v14
    %v20 = vpop.permute.xlu0 %19
    %23 = vset.pattern.permute.xlu0 0
    %24 = vperm.xlu0 %23, %v15
    %v25 = vpop.permute.xlu0 %24
    %v28 = vperm.slane %v16, 0
    %v30 = vmul.f32 %v20, %v28
    %v31 = vmul.f32 %v25, %v28
    %v32 = vand.u32 2147483647, %v30
    %vm33 = vcmp.le.f32.partialorder %v32, 0.7853982
    %vm34 = vcmp.lt.s32.totalorder %v30, 0
    %v35 = vand.u32 %v30, 2139095040
    %v36 = vshrl.u32 %v35, 23
    %v37 = vsub.s32 %v36, 127
    %v38 = vand.u32 2147483647, %v30
    %v39 = vand.u32 %v38, 8388607
    %v40 = vor.u32 %v39, 8388608
    %v41 = vsub.s32 0, %v40
    %v42 = vadd.s32 %v37, 1
    %vm43 = vcmp.gt.s32.totalorder %v42, 0
    %v44 = vsel %vm43, %v42, 0
    %v45 = vshrl.u32 %v44, 5
    %v46 = vand.u32 %v44, 31
    %v47 = vsub.s32 32, %v46
    %v48 = vshrl.u32 683565275, %v47
    %v49 = vshll.u32 683565275, %v46
    %v50 = vshrl.u32 2475754826, %v47
    %v51 = vor.u32 %v49, %v50
    %v52 = vshll.u32 2475754826, %v46
    %v53 = vshrl.u32 2131351028, %v47
    %v54 = vor.u32 %v52, %v53
    %v55 = vshll.u32 2131351028, %v46
    %v56 = vshrl.u32 2102212464, %v47
    %v57 = vor.u32 %v55, %v56
    %v58 = vshll.u32 2102212464, %v46
    %v59 = vshrl.u32 920167782, %v47
    %v60 = vor.u32 %v58, %v59
    %v61 = vshll.u32 920167782, %v46
    %v62 = vshrl.u32 1326507024, %v47
    %v63 = vor.u32 %v61, %v62
    %vm64 = vcmp.lt.s32.totalorder %v45, 1
    %vm65 = vcmp.lt.s32.totalorder %v45, 2
    %vm66 = vcmp.lt.s32.totalorder %v45, 3
    %vm67 = vcmp.lt.s32.totalorder %v45, 4
    %v68 = vsel %vm64, %v48, %v51
    %v69 = vsel %vm67, %v57, 2102212464
    %v70 = vsel %vm66, %v54, %v69
    %v71 = vsel %vm65, %v68, %v70
    %v72 = vsel %vm64, %v51, %v54
    %v73 = vsel %vm67, %v60, 920167782
    %v74 = vsel %vm66, %v57, %v73
    %v75 = vsel %vm65, %v72, %v74
    %v76 = vsel %vm64, %v54, %v57
    %v77 = vsel %vm67, %v63, 1326507024
    %v78 = vsel %vm66, %v60, %v77
    %v79 = vsel %vm65, %v76, %v78
    %v80 = vshll.u32 %v40, 8
    %v81 = vand.u32 %v80, 65535
    %v82 = vshrl.u32 %v80, 16
    %v83 = vand.u32 %v79, 65535
    %v84 = vshrl.u32 %v79, 16
    %v85 = vmul.u32 %v81, %v83
    %v86 = vmul.u32 %v81, %v84
    %v87 = vmul.u32 %v82, %v83
    %v88 = vmul.u32 %v82, %v84
    %v89 = vshll.u32 %v86, 16
    %v90 = vshrl.u32 %v86, 16
    %v91 = vshll.u32 %v87, 16
    %v92 = vshrl.u32 %v87, 16
    %vm93 = vc.u32 %v85, %v89
    %v94 = vsel %vm93, 1, 0
    %v95 = vadd.s32 %v85, %v89
    %v96 = vadd.s32 %v88, %v94
    %vm97 = vc.u32 %v95, %v91
    %v98 = vsel %vm97, 1, 0
    %v99 = vadd.s32 %v95, %v91
    %v100 = vadd.s32 %v96, %v98
    %v101 = vadd.s32 %v100, %v90
    %v102 = vadd.s32 %v101, %v92
    %v103 = vand.u32 %v80, 65535
    %v104 = vshrl.u32 %v80, 16
    %v105 = vand.u32 %v75, 65535
    %v106 = vshrl.u32 %v75, 16
    %v107 = vmul.u32 %v103, %v105
    %v108 = vmul.u32 %v103, %v106
    %v109 = vmul.u32 %v104, %v105
    %v110 = vmul.u32 %v104, %v106
    %v111 = vshll.u32 %v108, 16
    %v112 = vshrl.u32 %v108, 16
    %v113 = vshll.u32 %v109, 16
    %v114 = vshrl.u32 %v109, 16
    %vm115 = vc.u32 %v107, %v111
    %v116 = vsel %vm115, 1, 0
    %v117 = vadd.s32 %v107, %v111
    %v118 = vadd.s32 %v110, %v116
    %vm119 = vc.u32 %v117, %v113
    %v120 = vsel %vm119, 1, 0
    %v121 = vadd.s32 %v117, %v113
    %v122 = vadd.s32 %v118, %v120
    %v123 = vadd.s32 %v122, %v112
    %v124 = vadd.s32 %v123, %v114
    %v125 = vmul.u32 %v80, %v71
    %v126 = vadd.s32 %v102, %v121
    %vm127 = vc.u32 %v102, %v121
    %v128 = vadd.s32 %v124, 1
    %v129 = vsel %vm127, %v128, %v124
    %v130 = vadd.s32 %v125, %v129
    %v131 = vadd.s32 %v130, 536870912
    %v132 = vshrl.u32 %v131, 30
    %v133 = vshll.u32 %v132, 30
    %v134 = vsub.s32 %v130, %v133
    %vm135 = vcmp.lt.s32.totalorder %v134, 0
    %v136 = vsub.s32 0, %v134
    %v137 = vsel %vm135, %v136, %v134
    %v138 = vclz %v137
    %v139 = vsub.s32 %v138, 2
    %vm140 = vcmp.gt.s32.totalorder 0, %v139
    %v141 = vsel %vm140, 0, %v139
    %v142 = vsub.s32 32, %v141
    %v143 = vshll.u32 %v134, %v141
    %v144 = vshrl.u32 %v126, %v142
    %v145 = vor.u32 %v143, %v144
    %v146 = vsub.s32 4294967266, %v141
    %v147 = vadd.s32 %v146, 127
    %v148 = vshll.u32 %v147, 23
    %v149 = vor.u32 4788187, %v148
    %v150 = vand.u32 2147483647, %v149
    %v152 = vcvt.s32.f32 %v145
    %v153 = vmul.f32 %v152, %v150
    %v154 = vxor.u32 %v153, 2147483648
    %v155 = vsel %vm34, %v154, %v153
    %v156 = vsub.s32 4, %v132
    %v157 = vsel %vm34, %v156, %v132
    %v158 = vsel %vm33, %v30, %v155
    %v159 = vsel %vm33, 0, %v157
    %v160 = vmul.f32 %v158, %v158
    %v161 = vmul.f32 %v160, -0.001358992
    %v162 = vadd.f32 %v161, 0.041655596
    %v163 = vmul.f32 %v160, %v162
    %v164 = vadd.f32 %v163, -0.4999988
    %v165 = vmul.f32 %v160, %v164
    %v166 = vadd.f32 1.0, %v165
    %v167 = vmul.f32 %v158, %v158
    %v168 = vmul.f32 %v167, -0.00019511016
    %v169 = vadd.f32 %v168, 0.008332121
    %v170 = vmul.f32 %v167, %v169
    %v171 = vadd.f32 %v170, -0.16666654
    %v172 = vmul.f32 %v167, %v171
    %v173 = vadd.f32 %v172, 1.0
    %v174 = vmul.f32 %v173, %v158
    %vm175 = vweird.f32 %v30
    %v176 = vand.u32 %v159, 3
    %vm177 = vcmp.lt.s32.totalorder %v176, 2
    %vm178 = vcmp.eq.s32.totalorder %v176, 0
    %v179 = vxor.u32 %v174, 2147483648
    %v180 = vsel %vm178, %v166, %v179
    %vm181 = vcmp.eq.s32.totalorder %v176, 2
    %v182 = vxor.u32 %v166, 2147483648
    %v183 = vsel %vm181, %v182, %v174
    %v184 = vsel %vm177, %v180, %v183
    %v185 = vsel %vm175, nan, %v184
    %v186 = vand.u32 2147483647, %v31
    %vm187 = vcmp.le.f32.partialorder %v186, 0.7853982
    %vm188 = vcmp.lt.s32.totalorder %v31, 0
    %v189 = vand.u32 %v31, 2139095040
    %v190 = vshrl.u32 %v189, 23
    %v191 = vsub.s32 %v190, 127
    %v192 = vand.u32 2147483647, %v31
    %v193 = vand.u32 %v192, 8388607
    %v194 = vor.u32 %v193, 8388608
    %v195 = vsub.s32 0, %v194
    %v196 = vadd.s32 %v191, 1
    %vm197 = vcmp.gt.s32.totalorder %v196, 0
    %v198 = vsel %vm197, %v196, 0
    %v199 = vshrl.u32 %v198, 5
    %v200 = vand.u32 %v198, 31
    %v201 = vsub.s32 32, %v200
    %v202 = vshrl.u32 683565275, %v201
    %v203 = vshll.u32 683565275, %v200
    %v204 = vshrl.u32 2475754826, %v201
    %v205 = vor.u32 %v203, %v204
    %v206 = vshll.u32 2475754826, %v200
    %v207 = vshrl.u32 2131351028, %v201
    %v208 = vor.u32 %v206, %v207
    %v209 = vshll.u32 2131351028, %v200
    %v210 = vshrl.u32 2102212464, %v201
    %v211 = vor.u32 %v209, %v210
    %v212 = vshll.u32 2102212464, %v200
    %v213 = vshrl.u32 920167782, %v201
    %v214 = vor.u32 %v212, %v213
    %v215 = vshll.u32 920167782, %v200
    %v216 = vshrl.u32 1326507024, %v201
    %v217 = vor.u32 %v215, %v216
    %vm218 = vcmp.lt.s32.totalorder %v199, 1
    %vm219 = vcmp.lt.s32.totalorder %v199, 2
    %vm220 = vcmp.lt.s32.totalorder %v199, 3
    %vm221 = vcmp.lt.s32.totalorder %v199, 4
    %v222 = vsel %vm218, %v202, %v205
    %v223 = vsel %vm221, %v211, 2102212464
    %v224 = vsel %vm220, %v208, %v223
    %v225 = vsel %vm219, %v222, %v224
    %v226 = vsel %vm218, %v205, %v208
    %v227 = vsel %vm221, %v214, 920167782
    %v228 = vsel %vm220, %v211, %v227
    %v229 = vsel %vm219, %v226, %v228
    %v230 = vsel %vm218, %v208, %v211
    %v231 = vsel %vm221, %v217, 1326507024
    %v232 = vsel %vm220, %v214, %v231
    %v233 = vsel %vm219, %v230, %v232
    %v234 = vshll.u32 %v194, 8
    %v235 = vand.u32 %v234, 65535
    %v236 = vshrl.u32 %v234, 16
    %v237 = vand.u32 %v233, 65535
    %v238 = vshrl.u32 %v233, 16
    %v239 = vmul.u32 %v235, %v237
    %v240 = vmul.u32 %v235, %v238
    %v241 = vmul.u32 %v236, %v237
    %v242 = vmul.u32 %v236, %v238
    %v243 = vshll.u32 %v240, 16
    %v244 = vshrl.u32 %v240, 16
    %v245 = vshll.u32 %v241, 16
    %v246 = vshrl.u32 %v241, 16
    %vm247 = vc.u32 %v239, %v243
    %v248 = vsel %vm247, 1, 0
    %v249 = vadd.s32 %v239, %v243
    %v250 = vadd.s32 %v242, %v248
    %vm251 = vc.u32 %v249, %v245
    %v252 = vsel %vm251, 1, 0
    %v253 = vadd.s32 %v249, %v245
    %v254 = vadd.s32 %v250, %v252
    %v255 = vadd.s32 %v254, %v244
    %v256 = vadd.s32 %v255, %v246
    %v257 = vand.u32 %v234, 65535
    %v258 = vshrl.u32 %v234, 16
    %v259 = vand.u32 %v229, 65535
    %v260 = vshrl.u32 %v229, 16
    %v261 = vmul.u32 %v257, %v259
    %v262 = vmul.u32 %v257, %v260
    %v263 = vmul.u32 %v258, %v259
    %v264 = vmul.u32 %v258, %v260
    %v265 = vshll.u32 %v262, 16
    %v266 = vshrl.u32 %v262, 16
    %v267 = vshll.u32 %v263, 16
    %v268 = vshrl.u32 %v263, 16
    %vm269 = vc.u32 %v261, %v265
    %v270 = vsel %vm269, 1, 0
    %v271 = vadd.s32 %v261, %v265
    %v272 = vadd.s32 %v264, %v270
    %vm273 = vc.u32 %v271, %v267
    %v274 = vsel %vm273, 1, 0
    %v275 = vadd.s32 %v271, %v267
    %v276 = vadd.s32 %v272, %v274
    %v277 = vadd.s32 %v276, %v266
    %v278 = vadd.s32 %v277, %v268
    %v279 = vmul.u32 %v234, %v225
    %v280 = vadd.s32 %v256, %v275
    %vm281 = vc.u32 %v256, %v275
    %v282 = vadd.s32 %v278, 1
    %v283 = vsel %vm281, %v282, %v278
    %v284 = vadd.s32 %v279, %v283
    %v285 = vadd.s32 %v284, 536870912
    %v286 = vshrl.u32 %v285, 30
    %v287 = vshll.u32 %v286, 30
    %v288 = vsub.s32 %v284, %v287
    %vm289 = vcmp.lt.s32.totalorder %v288, 0
    %v290 = vsub.s32 0, %v288
    %v291 = vsel %vm289, %v290, %v288
    %v292 = vclz %v291
    %v293 = vsub.s32 %v292, 2
    %vm294 = vcmp.gt.s32.totalorder 0, %v293
    %v295 = vsel %vm294, 0, %v293
    %v296 = vsub.s32 32, %v295
    %v297 = vshll.u32 %v288, %v295
    %v298 = vshrl.u32 %v280, %v296
    %v299 = vor.u32 %v297, %v298
    %v300 = vsub.s32 4294967266, %v295
    %v301 = vadd.s32 %v300, 127
    %v302 = vshll.u32 %v301, 23
    %v303 = vor.u32 4788187, %v302
    %v304 = vand.u32 2147483647, %v303
    %v306 = vcvt.s32.f32 %v299
    %v307 = vmul.f32 %v306, %v304
    %v308 = vxor.u32 %v307, 2147483648
    %v309 = vsel %vm188, %v308, %v307
    %v310 = vsub.s32 4, %v286
    %v311 = vsel %vm188, %v310, %v286
    %v312 = vsel %vm187, %v31, %v309
    %v313 = vsel %vm187, 0, %v311
    %v314 = vmul.f32 %v312, %v312
    %v315 = vmul.f32 %v314, -0.001358992
    %v316 = vadd.f32 %v315, 0.041655596
    %v317 = vmul.f32 %v314, %v316
    %v318 = vadd.f32 %v317, -0.4999988
    %v319 = vmul.f32 %v314, %v318
    %v320 = vadd.f32 1.0, %v319
    %v321 = vmul.f32 %v312, %v312
    %v322 = vmul.f32 %v321, -0.00019511016
    %v323 = vadd.f32 %v322, 0.008332121
    %v324 = vmul.f32 %v321, %v323
    %v325 = vadd.f32 %v324, -0.16666654
    %v326 = vmul.f32 %v321, %v325
    %v327 = vadd.f32 %v326, 1.0
    %v328 = vmul.f32 %v327, %v312
    %vm329 = vweird.f32 %v31
    %v330 = vand.u32 %v313, 3
    %vm331 = vcmp.lt.s32.totalorder %v330, 2
    %vm332 = vcmp.eq.s32.totalorder %v330, 0
    %v333 = vxor.u32 %v328, 2147483648
    %v334 = vsel %vm332, %v320, %v333
    %vm335 = vcmp.eq.s32.totalorder %v330, 2
    %v336 = vxor.u32 %v320, 2147483648
    %v337 = vsel %vm335, %v336, %v328
    %v338 = vsel %vm331, %v334, %v337
    %v339 = vsel %vm329, nan, %v338
    %340 = vst [vmem:[#allocation2] sm:$0xff] %v185
    %341 = vst [vmem:[#allocation2 + $0x8] sm:$0xff] %v339
    %v342 = vand.u32 2147483647, %v30
    %vm343 = vcmp.le.f32.partialorder %v342, 0.7853982
    %vm344 = vcmp.lt.s32.totalorder %v30, 0
    %v345 = vand.u32 %v30, 2139095040
    %v346 = vshrl.u32 %v345, 23
    %v347 = vsub.s32 %v346, 127
    %v348 = vand.u32 2147483647, %v30
    %v349 = vand.u32 %v348, 8388607
    %v350 = vor.u32 %v349, 8388608
    %v351 = vsub.s32 0, %v350
    %v352 = vadd.s32 %v347, 1
    %vm353 = vcmp.gt.s32.totalorder %v352, 0
    %v354 = vsel %vm353, %v352, 0
    %v355 = vshrl.u32 %v354, 5
    %v356 = vand.u32 %v354, 31
    %v357 = vsub.s32 32, %v356
    %v358 = vshrl.u32 683565275, %v357
    %v359 = vshll.u32 683565275, %v356
    %v360 = vshrl.u32 2475754826, %v357
    %v361 = vor.u32 %v359, %v360
    %v362 = vshll.u32 2475754826, %v356
    %v363 = vshrl.u32 2131351028, %v357
    %v364 = vor.u32 %v362, %v363
    %v365 = vshll.u32 2131351028, %v356
    %v366 = vshrl.u32 2102212464, %v357
    %v367 = vor.u32 %v365, %v366
    %v368 = vshll.u32 2102212464, %v356
    %v369 = vshrl.u32 920167782, %v357
    %v370 = vor.u32 %v368, %v369
    %v371 = vshll.u32 920167782, %v356
    %v372 = vshrl.u32 1326507024, %v357
    %v373 = vor.u32 %v371, %v372
    %vm374 = vcmp.lt.s32.totalorder %v355, 1
    %vm375 = vcmp.lt.s32.totalorder %v355, 2
    %vm376 = vcmp.lt.s32.totalorder %v355, 3
    %vm377 = vcmp.lt.s32.totalorder %v355, 4
    %v378 = vsel %vm374, %v358, %v361
    %v379 = vsel %vm377, %v367, 2102212464
    %v380 = vsel %vm376, %v364, %v379
    %v381 = vsel %vm375, %v378, %v380
    %v382 = vsel %vm374, %v361, %v364
    %v383 = vsel %vm377, %v370, 920167782
    %v384 = vsel %vm376, %v367, %v383
    %v385 = vsel %vm375, %v382, %v384
    %v386 = vsel %vm374, %v364, %v367
    %v387 = vsel %vm377, %v373, 1326507024
    %v388 = vsel %vm376, %v370, %v387
    %v389 = vsel %vm375, %v386, %v388
    %v390 = vshll.u32 %v350, 8
    %v391 = vand.u32 %v390, 65535
    %v392 = vshrl.u32 %v390, 16
    %v393 = vand.u32 %v389, 65535
    %v394 = vshrl.u32 %v389, 16
    %v395 = vmul.u32 %v391, %v393
    %v396 = vmul.u32 %v391, %v394
    %v397 = vmul.u32 %v392, %v393
    %v398 = vmul.u32 %v392, %v394
    %v399 = vshll.u32 %v396, 16
    %v400 = vshrl.u32 %v396, 16
    %v401 = vshll.u32 %v397, 16
    %v402 = vshrl.u32 %v397, 16
    %vm403 = vc.u32 %v395, %v399
    %v404 = vsel %vm403, 1, 0
    %v405 = vadd.s32 %v395, %v399
    %v406 = vadd.s32 %v398, %v404
    %vm407 = vc.u32 %v405, %v401
    %v408 = vsel %vm407, 1, 0
    %v409 = vadd.s32 %v405, %v401
    %v410 = vadd.s32 %v406, %v408
    %v411 = vadd.s32 %v410, %v400
    %v412 = vadd.s32 %v411, %v402
    %v413 = vand.u32 %v390, 65535
    %v414 = vshrl.u32 %v390, 16
    %v415 = vand.u32 %v385, 65535
    %v416 = vshrl.u32 %v385, 16
    %v417 = vmul.u32 %v413, %v415
    %v418 = vmul.u32 %v413, %v416
    %v419 = vmul.u32 %v414, %v415
    %v420 = vmul.u32 %v414, %v416
    %v421 = vshll.u32 %v418, 16
    %v422 = vshrl.u32 %v418, 16
    %v423 = vshll.u32 %v419, 16
    %v424 = vshrl.u32 %v419, 16
    %vm425 = vc.u32 %v417, %v421
    %v426 = vsel %vm425, 1, 0
    %v427 = vadd.s32 %v417, %v421
    %v428 = vadd.s32 %v420, %v426
    %vm429 = vc.u32 %v427, %v423
    %v430 = vsel %vm429, 1, 0
    %v431 = vadd.s32 %v427, %v423
    %v432 = vadd.s32 %v428, %v430
    %v433 = vadd.s32 %v432, %v422
    %v434 = vadd.s32 %v433, %v424
    %v435 = vmul.u32 %v390, %v381
    %v436 = vadd.s32 %v412, %v431
    %vm437 = vc.u32 %v412, %v431
    %v438 = vadd.s32 %v434, 1
    %v439 = vsel %vm437, %v438, %v434
    %v440 = vadd.s32 %v435, %v439
    %v441 = vadd.s32 %v440, 536870912
    %v442 = vshrl.u32 %v441, 30
    %v443 = vshll.u32 %v442, 30
    %v444 = vsub.s32 %v440, %v443
    %vm445 = vcmp.lt.s32.totalorder %v444, 0
    %v446 = vsub.s32 0, %v444
    %v447 = vsel %vm445, %v446, %v444
    %v448 = vclz %v447
    %v449 = vsub.s32 %v448, 2
    %vm450 = vcmp.gt.s32.totalorder 0, %v449
    %v451 = vsel %vm450, 0, %v449
    %v452 = vsub.s32 32, %v451
    %v453 = vshll.u32 %v444, %v451
    %v454 = vshrl.u32 %v436, %v452
    %v455 = vor.u32 %v453, %v454
    %v456 = vsub.s32 4294967266, %v451
    %v457 = vadd.s32 %v456, 127
    %v458 = vshll.u32 %v457, 23
    %v459 = vor.u32 4788187, %v458
    %v460 = vand.u32 2147483647, %v459
    %v462 = vcvt.s32.f32 %v455
    %v463 = vmul.f32 %v462, %v460
    %v464 = vxor.u32 %v463, 2147483648
    %v465 = vsel %vm344, %v464, %v463
    %v466 = vsub.s32 4, %v442
    %v467 = vsel %vm344, %v466, %v442
    %v468 = vsel %vm343, %v30, %v465
    %v469 = vsel %vm343, 0, %v467
    %v470 = vmul.f32 %v468, %v468
    %v471 = vmul.f32 %v470, -0.001358992
    %v472 = vadd.f32 %v471, 0.041655596
    %v473 = vmul.f32 %v470, %v472
    %v474 = vadd.f32 %v473, -0.4999988
    %v475 = vmul.f32 %v470, %v474
    %v476 = vadd.f32 1.0, %v475
    %v477 = vmul.f32 %v468, %v468
    %v478 = vmul.f32 %v477, -0.00019511016
    %v479 = vadd.f32 %v478, 0.008332121
    %v480 = vmul.f32 %v477, %v479
    %v481 = vadd.f32 %v480, -0.16666654
    %v482 = vmul.f32 %v477, %v481
    %v483 = vadd.f32 %v482, 1.0
    %v484 = vmul.f32 %v483, %v468
    %vm485 = vweird.f32 %v30
    %v486 = vadd.s32 %v469, 3
    %v487 = vand.u32 %v486, 3
    %vm488 = vcmp.lt.s32.totalorder %v487, 2
    %vm489 = vcmp.eq.s32.totalorder %v487, 0
    %v490 = vxor.u32 %v484, 2147483648
    %v491 = vsel %vm489, %v476, %v490
    %vm492 = vcmp.eq.s32.totalorder %v487, 2
    %v493 = vxor.u32 %v476, 2147483648
    %v494 = vsel %vm492, %v493, %v484
    %v495 = vsel %vm488, %v491, %v494
    %v496 = vsel %vm485, nan, %v495
    %v497 = vand.u32 2147483647, %v31
    %vm498 = vcmp.le.f32.partialorder %v497, 0.7853982
    %vm499 = vcmp.lt.s32.totalorder %v31, 0
    %v500 = vand.u32 %v31, 2139095040
    %v501 = vshrl.u32 %v500, 23
    %v502 = vsub.s32 %v501, 127
    %v503 = vand.u32 2147483647, %v31
    %v504 = vand.u32 %v503, 8388607
    %v505 = vor.u32 %v504, 8388608
    %v506 = vsub.s32 0, %v505
    %v507 = vadd.s32 %v502, 1
    %vm508 = vcmp.gt.s32.totalorder %v507, 0
    %v509 = vsel %vm508, %v507, 0
    %v510 = vshrl.u32 %v509, 5
    %v511 = vand.u32 %v509, 31
    %v512 = vsub.s32 32, %v511
    %v513 = vshrl.u32 683565275, %v512
    %v514 = vshll.u32 683565275, %v511
    %v515 = vshrl.u32 2475754826, %v512
    %v516 = vor.u32 %v514, %v515
    %v517 = vshll.u32 2475754826, %v511
    %v518 = vshrl.u32 2131351028, %v512
    %v519 = vor.u32 %v517, %v518
    %v520 = vshll.u32 2131351028, %v511
    %v521 = vshrl.u32 2102212464, %v512
    %v522 = vor.u32 %v520, %v521
    %v523 = vshll.u32 2102212464, %v511
    %v524 = vshrl.u32 920167782, %v512
    %v525 = vor.u32 %v523, %v524
    %v526 = vshll.u32 920167782, %v511
    %v527 = vshrl.u32 1326507024, %v512
    %v528 = vor.u32 %v526, %v527
    %vm529 = vcmp.lt.s32.totalorder %v510, 1
    %vm530 = vcmp.lt.s32.totalorder %v510, 2
    %vm531 = vcmp.lt.s32.totalorder %v510, 3
    %vm532 = vcmp.lt.s32.totalorder %v510, 4
    %v533 = vsel %vm529, %v513, %v516
    %v534 = vsel %vm532, %v522, 2102212464
    %v535 = vsel %vm531, %v519, %v534
    %v536 = vsel %vm530, %v533, %v535
    %v537 = vsel %vm529, %v516, %v519
    %v538 = vsel %vm532, %v525, 920167782
    %v539 = vsel %vm531, %v522, %v538
    %v540 = vsel %vm530, %v537, %v539
    %v541 = vsel %vm529, %v519, %v522
    %v542 = vsel %vm532, %v528, 1326507024
    %v543 = vsel %vm531, %v525, %v542
    %v544 = vsel %vm530, %v541, %v543
    %v545 = vshll.u32 %v505, 8
    %v546 = vand.u32 %v545, 65535
    %v547 = vshrl.u32 %v545, 16
    %v548 = vand.u32 %v544, 65535
    %v549 = vshrl.u32 %v544, 16
    %v550 = vmul.u32 %v546, %v548
    %v551 = vmul.u32 %v546, %v549
    %v552 = vmul.u32 %v547, %v548
    %v553 = vmul.u32 %v547, %v549
    %v554 = vshll.u32 %v551, 16
    %v555 = vshrl.u32 %v551, 16
    %v556 = vshll.u32 %v552, 16
    %v557 = vshrl.u32 %v552, 16
    %vm558 = vc.u32 %v550, %v554
    %v559 = vsel %vm558, 1, 0
    %v560 = vadd.s32 %v550, %v554
    %v561 = vadd.s32 %v553, %v559
    %vm562 = vc.u32 %v560, %v556
    %v563 = vsel %vm562, 1, 0
    %v564 = vadd.s32 %v560, %v556
    %v565 = vadd.s32 %v561, %v563
    %v566 = vadd.s32 %v565, %v555
    %v567 = vadd.s32 %v566, %v557
    %v568 = vand.u32 %v545, 65535
    %v569 = vshrl.u32 %v545, 16
    %v570 = vand.u32 %v540, 65535
    %v571 = vshrl.u32 %v540, 16
    %v572 = vmul.u32 %v568, %v570
    %v573 = vmul.u32 %v568, %v571
    %v574 = vmul.u32 %v569, %v570
    %v575 = vmul.u32 %v569, %v571
    %v576 = vshll.u32 %v573, 16
    %v577 = vshrl.u32 %v573, 16
    %v578 = vshll.u32 %v574, 16
    %v579 = vshrl.u32 %v574, 16
    %vm580 = vc.u32 %v572, %v576
    %v581 = vsel %vm580, 1, 0
    %v582 = vadd.s32 %v572, %v576
    %v583 = vadd.s32 %v575, %v581
    %vm584 = vc.u32 %v582, %v578
    %v585 = vsel %vm584, 1, 0
    %v586 = vadd.s32 %v582, %v578
    %v587 = vadd.s32 %v583, %v585
    %v588 = vadd.s32 %v587, %v577
    %v589 = vadd.s32 %v588, %v579
    %v590 = vmul.u32 %v545, %v536
    %v591 = vadd.s32 %v567, %v586
    %vm592 = vc.u32 %v567, %v586
    %v593 = vadd.s32 %v589, 1
    %v594 = vsel %vm592, %v593, %v589
    %v595 = vadd.s32 %v590, %v594
    %v596 = vadd.s32 %v595, 536870912
    %v597 = vshrl.u32 %v596, 30
    %v598 = vshll.u32 %v597, 30
    %v599 = vsub.s32 %v595, %v598
    %vm600 = vcmp.lt.s32.totalorder %v599, 0
    %v601 = vsub.s32 0, %v599
    %v602 = vsel %vm600, %v601, %v599
    %v603 = vclz %v602
    %v604 = vsub.s32 %v603, 2
    %vm605 = vcmp.gt.s32.totalorder 0, %v604
    %v606 = vsel %vm605, 0, %v604
    %v607 = vsub.s32 32, %v606
    %v608 = vshll.u32 %v599, %v606
    %v609 = vshrl.u32 %v591, %v607
    %v610 = vor.u32 %v608, %v609
    %v611 = vsub.s32 4294967266, %v606
    %v612 = vadd.s32 %v611, 127
    %v613 = vshll.u32 %v612, 23
    %v614 = vor.u32 4788187, %v613
    %v615 = vand.u32 2147483647, %v614
    %v617 = vcvt.s32.f32 %v610
    %v618 = vmul.f32 %v617, %v615
    %v619 = vxor.u32 %v618, 2147483648
    %v620 = vsel %vm499, %v619, %v618
    %v621 = vsub.s32 4, %v597
    %v622 = vsel %vm499, %v621, %v597
    %v623 = vsel %vm498, %v31, %v620
    %v624 = vsel %vm498, 0, %v622
    %v625 = vmul.f32 %v623, %v623
    %v626 = vmul.f32 %v625, -0.001358992
    %v627 = vadd.f32 %v626, 0.041655596
    %v628 = vmul.f32 %v625, %v627
    %v629 = vadd.f32 %v628, -0.4999988
    %v630 = vmul.f32 %v625, %v629
    %v631 = vadd.f32 1.0, %v630
    %v632 = vmul.f32 %v623, %v623
    %v633 = vmul.f32 %v632, -0.00019511016
    %v634 = vadd.f32 %v633, 0.008332121
    %v635 = vmul.f32 %v632, %v634
    %v636 = vadd.f32 %v635, -0.16666654
    %v637 = vmul.f32 %v632, %v636
    %v638 = vadd.f32 %v637, 1.0
    %v639 = vmul.f32 %v638, %v623
    %vm640 = vweird.f32 %v31
    %v641 = vadd.s32 %v624, 3
    %v642 = vand.u32 %v641, 3
    %vm643 = vcmp.lt.s32.totalorder %v642, 2
    %vm644 = vcmp.eq.s32.totalorder %v642, 0
    %v645 = vxor.u32 %v639, 2147483648
    %v646 = vsel %vm644, %v631, %v645
    %vm647 = vcmp.eq.s32.totalorder %v642, 2
    %v648 = vxor.u32 %v631, 2147483648
    %v649 = vsel %vm647, %v648, %v639
    %v650 = vsel %vm643, %v646, %v649
    %v651 = vsel %vm640, nan, %v650
    %652 = vst [vmem:[#allocation2 + $0x10] sm:$0xff] %v496
    %653 = vst [vmem:[#allocation2 + $0x18] sm:$0xff] %v651
    // Predicated region
    $region10: #{tpu_custom_call.1} parent=1 // pred_check
      _
    $region11: #{tpu_custom_call.1} parent=1 // pred_check_branch
      %655 = sbr.rel (0) target = $region13
    $region12: #{tpu_custom_call.1} parent=1 // pred_region
      %657 = vsyncadd [#allocation3], 0
      %s658 = sshll.u32 [#allocation2], 4
      %s659 = int_to_ptr.vmem [resolvable:$true] %s658
      %s660 = sshll.u32 %s2, 4
      %s661 = int_to_ptr.hbm [resolvable:$true] %s660
      %666 = dma.vmem_to_hbm [thread:$0]  %s659, 512, %s661, [#allocation3], 128, 128, 8
    $region13: #{tpu_custom_call.1} parent=1 // pred_fallthru
      _
    // Predicated region
    $region14: #{tpu_custom_call.1} parent=1 // pred_check
      _
    $region15: #{tpu_custom_call.1} parent=1 // pred_check_branch
      %668 = sbr.rel (0) target = $region17
    $region16: #{tpu_custom_call.1} parent=1 // pred_region
      %670 = dma.done [#allocation3], 512
    $region17: #{tpu_custom_call.1} parent=1 // pred_fallthru
      _
    %671 = vsyncpa [#allocation3], 1

</llo_original>
